<compile_context>
chip_gen: v5e
topology: v5e:2x2
jax: 0.10.0
libtpu: 0.0.40
codegen_flags: <defaults>
</compile_context>

<pallas_src>
import functools

import jax
import jax.numpy as jnp
from jax.experimental import pallas as pl
from jax.experimental.pallas import tpu as pltpu


def _round_up(n, m):
    return ((n + m - 1) // m) * m


def _mlp_kernel(x_ref, w1_ref, b1_ref, w2_ref, b2_ref, w3_ref, o_ref):
    """relu(x@W1+b1) -> relu(.@W2+b2) -> sum(. * w3_row), lane-dense (1, bm) store."""
    bm = o_ref.shape[-1]
    # Cast to the MXU dtype inside the kernel (VPU cast is free filler; reading
    # x as f32 directly avoids a wrapper-side read+write cast pass over HBM).
    x = x_ref[...].astype(w1_ref.dtype)                              # (bm, d_in) bf16
    h = jnp.dot(x, w1_ref[...], preferred_element_type=jnp.float32)
    h = jnp.maximum(h + b1_ref[...], 0.0)                            # f32 (bm, h1_p)
    h = jnp.dot(h.astype(w2_ref.dtype), w2_ref[...],
                preferred_element_type=jnp.float32)
    h = jnp.maximum(h + b2_ref[...], 0.0)                            # f32 (bm, h2_p)
    # Final layer has one output column: do it on the VPU/XLU (multiply + lane
    # reduction) to keep the MXU free, and emit a lane-dense (1, bm) row.
    # NOTE: the (bm,) -> (1, bm) relayout is a small XLU transpose; hidden under
    # the x DMA at these sizes (re-check the bundle if block_batch grows a lot).
    row = jnp.reshape(jnp.sum(h * w3_ref[...], axis=-1), (1, bm))
    o_ref[...] = row[None].astype(o_ref.dtype)                       # (1, 1, bm)


def prepare_discriminator_params(params, compute_dtype=jnp.bfloat16):
    """Pad/cast parameters ONCE (call outside the per-step jit / training loop).

    params: dict with w1,b1,w2,b2,w3,b3 (weights as [in, out], biases as [1, out]).
    Returns a dict of device arrays ready for discriminator_forward.
    """
    w1, b1 = params["w1"], params["b1"]
    w2, b2 = params["w2"], params["b2"]
    w3, b3 = params["w3"], params["b3"]
    d_in, h1 = w1.shape
    h2, d_out = w3.shape
    assert w2.shape == (h1, h2)
    assert d_out == 1, "Discriminator kernel assumes output_dims == 1 (squeeze)"

    # Hidden widths padded to 128 lanes so every vreg / MXU pass is fully
    # occupied and all loads/stores are unmasked.  Padded weight cols/rows and
    # bias entries are zero, so ReLU(0 + 0) = 0 keeps the math identical.
    h1_p = _round_up(h1, 128)
    h2_p = _round_up(h2, 128)

    def pad2(a, r, c):
        return jnp.pad(a, ((0, r - a.shape[0]), (0, c - a.shape[1])))

    return {
        "w1": pad2(w1, d_in, h1_p).astype(compute_dtype),            # (d_in, h1_p) bf16
        "b1": pad2(b1.astype(jnp.float32), 1, h1_p),                 # (1, h1_p) f32
        "w2": pad2(w2, h1_p, h2_p).astype(compute_dtype),            # (h1_p, h2_p) bf16
        "b2": pad2(b2.astype(jnp.float32), 1, h2_p),                 # (1, h2_p) f32
        "w3_row": pad2(w3.astype(jnp.float32).T, 1, h2_p),           # (1, h2_p) f32 (VPU)
        "b3": b3.astype(jnp.float32).reshape(()),                    # scalar, added in wrapper
    }


def _default_block_batch(b):
    # >=128 rows for MXU/lane alignment.  For larger batches prefer >=2 grid
    # steps (keeps both v7x TensorCores busy via dimension_semantics) while
    # capping the tile at 2048 rows to amortize the ~0.35us per-step overhead.
    if b <= 128:
        return 128
    half = _round_up(-(-b // 2), 128)
    return max(128, min(2048, half))


def discriminator_forward(prep, *inputs, block_batch=None):
    """Pallas-backed Discriminator forward.

    prep: output of prepare_discriminator_params.
    *inputs: one or more [batch, feat_i] arrays concatenated along the last dim.
    Returns [batch] (squeeze=True, output_dims == 1).
    """
    # TODO(synk): for multi-input calls at large batch, split the first matmul
    # per input (x_i @ W1[off_i:off_i+d_i]) instead of materializing the concat.
    x = jnp.concatenate(inputs, axis=-1) if len(inputs) > 1 else inputs[0]
    b, d_in = x.shape

    w1_p, b1_p = prep["w1"], prep["b1"]
    w2_p, b2_p = prep["w2"], prep["b2"]
    w3_row, b3 = prep["w3_row"], prep["b3"]
    assert w1_p.shape[0] == d_in, "input feature dim mismatch with prepared W1"
    h1_p, h2_p = w1_p.shape[1], w2_p.shape[1]

    if block_batch is None:
        block_batch = _default_block_batch(b)
    assert block_batch % 128 == 0, "block_batch must be a multiple of 128"

    # No padding of x: the batch grid uses cdiv and Pallas handles the ragged
    # edge block (its garbage rows never escape the [:b] slice below); the
    # feature dim stays at its true size (block last dim == full array dim).
    grid_n = pl.cdiv(b, block_batch)

    # --- VMEM budget guard (resident-weight strategy) -----------------------
    resident_bytes = (d_in * h1_p + h1_p * h2_p) * w1_p.dtype.itemsize \
        + (h1_p + 2 * h2_p) * 4
    stream_bytes = 2 * block_batch * (d_in * x.dtype.itemsize + 4)   # 2x-buffered x + out
    act_bytes = block_batch * (h1_p + h2_p) * 4                      # f32 intermediates
    vmem_needed = resident_bytes + stream_bytes + act_bytes
    compiler_kwargs = dict(dimension_semantics=("parallel",))
    if vmem_needed > 24 * 1024 * 1024:
        # TODO(synk): for hidden sizes >= ~2048 (W2 alone tens of MiB) switch to
        # a K-tiled grid (extra 'arbitrary' axis + f32 accumulator scratch)
        # instead of resident weights -- v7x only has 64 MiB physical VMEM.
        compiler_kwargs["vmem_limit_bytes"] = int(min(2 * vmem_needed, 60 * 1024 * 1024))

    out3d = pl.pallas_call(
        _mlp_kernel,
        out_shape=jax.ShapeDtypeStruct((grid_n, 1, block_batch), jnp.float32),
        grid_spec=pltpu.PrefetchScalarGridSpec(
            num_scalar_prefetch=0,
            grid=(grid_n,),
            in_specs=[
                pl.BlockSpec((block_batch, d_in), lambda i: (i, 0)),  # x tile (true d_in)
                pl.BlockSpec((d_in, h1_p), lambda i: (0, 0)),         # W1 (resident)
                pl.BlockSpec((1, h1_p), lambda i: (0, 0)),            # b1
                pl.BlockSpec((h1_p, h2_p), lambda i: (0, 0)),         # W2 (resident)
                pl.BlockSpec((1, h2_p), lambda i: (0, 0)),            # b2
                pl.BlockSpec((1, h2_p), lambda i: (0, 0)),            # w3 row
            ],
            out_specs=pl.BlockSpec((1, 1, block_batch), lambda i: (i, 0, 0)),
        ),
        compiler_params=pltpu.CompilerParams(**compiler_kwargs),
    )(x, w1_p, b1_p, w2_p, b2_p, w3_row)

    # Lane-dense output rows -> flatten, drop ragged-edge garbage, add b3 scalar.
    return out3d.reshape(-1)[:b] + b3


def init_discriminator_params(key, input_dims, hidden_sizes, output_dims,
                              dtype=jnp.float32):
    """Deterministic synthetic parameter init (weights stored as [in, out])."""
    dims = [input_dims, *hidden_sizes, output_dims]
    params = {}
    keys = jax.random.split(key, len(dims) - 1)
    for li, (d_i, d_o) in enumerate(zip(dims[:-1], dims[1:]), start=1):
        kw, kb = jax.random.split(keys[li - 1])
        scale = 1.0 / jnp.sqrt(jnp.float32(d_i))
        params[f"w{li}"] = (jax.random.uniform(kw, (d_i, d_o), dtype=jnp.float32,
                                               minval=-1.0, maxval=1.0) * scale).astype(dtype)
        params[f"b{li}"] = (jax.random.uniform(kb, (1, d_o), dtype=jnp.float32,
                                               minval=-1.0, maxval=1.0) * scale).astype(dtype)
    return params


def _reference_forward_f32(params, *inputs):
    """Plain-JAX f32 reference (matches the PyTorch module's math)."""
    x = jnp.concatenate(inputs, axis=-1) if len(inputs) > 1 else inputs[0]
    h = jnp.maximum(x @ params["w1"] + params["b1"], 0.0)
    h = jnp.maximum(h @ params["w2"] + params["b2"], 0.0)
    out = h @ params["w3"] + params["b3"]
    return out[:, 0]


def _reference_forward_mirrored(params, *inputs, compute_dtype=jnp.bfloat16):
    """Reference mirroring the kernel's bf16-matmul / f32-accumulate recipe."""
    x = jnp.concatenate(inputs, axis=-1) if len(inputs) > 1 else inputs[0]
    w1 = params["w1"].astype(compute_dtype)
    w2 = params["w2"].astype(compute_dtype)
    h = jnp.dot(x.astype(compute_dtype), w1, preferred_element_type=jnp.float32)
    h = jnp.maximum(h + params["b1"].astype(jnp.float32), 0.0)
    h = jnp.dot(h.astype(compute_dtype), w2, preferred_element_type=jnp.float32)
    h = jnp.maximum(h + params["b2"].astype(jnp.float32), 0.0)
    w3_row = params["w3"].astype(jnp.float32)[:, 0][None, :]
    return jnp.sum(h * w3_row, axis=-1) + params["b3"].astype(jnp.float32)[0, 0]


if __name__ == "__main__":
    # Small shapes consistent with the module: Discriminator(input_dims=32,
    # hidden_sizes=[64, 64], output_dims=1), batch=16.
    batch = 16
    input_dims = 32
    hidden_sizes = [64, 64]
    output_dims = 1

    key = jax.random.PRNGKey(0)
    k_params, k_x = jax.random.split(key)

    params = init_discriminator_params(k_params, input_dims, hidden_sizes, output_dims)
    x = jax.random.normal(k_x, (batch, input_dims), dtype=jnp.float32)

    # Pad/cast the weights exactly once, outside the jitted per-step call.
    prep = prepare_discriminator_params(params)
    prep = jax.tree_util.tree_map(jax.block_until_ready, prep)

    fwd = jax.jit(functools.partial(discriminator_forward, block_batch=128))
    y = fwd(prep, x)
    jax.block_until_ready(y)
    assert y.shape == (batch,), f"expected shape ({batch},), got {y.shape}"

    y_ref_bf = _reference_forward_mirrored(params, x)
    y_ref_32 = _reference_forward_f32(params, x)
    assert jnp.allclose(y, y_ref_bf, atol=2e-3, rtol=2e-3), "mismatch vs bf16-mirrored ref"
    assert jnp.allclose(y, y_ref_32, atol=5e-2, rtol=5e-2), "mismatch vs f32 reference"

    # Multi-input path: forward(*inputs) concatenates along the last dim.
    xa, xb = x[:, :20], x[:, 20:]
    y2 = jax.jit(discriminator_forward)(prep, xa, xb)
    jax.block_until_ready(y2)
    assert y2.shape == (batch,)
    assert jnp.allclose(y2, y_ref_bf, atol=2e-3, rtol=2e-3), "multi-input mismatch"

    # Larger-batch path exercises the ragged edge block + multi-step grid.
    xl = jax.random.normal(jax.random.PRNGKey(1), (300, input_dims), dtype=jnp.float32)
    yl = jax.jit(discriminator_forward)(prep, xl)
    jax.block_until_ready(yl)
    assert yl.shape == (300,)
    assert jnp.allclose(yl, _reference_forward_mirrored(params, xl), atol=2e-3, rtol=2e-3), \
        "large-batch / ragged-edge mismatch"

    print("KERNEL_OK")
</pallas_src>

<mosaic_0001>
module attributes {stable_mosaic.version = 11 : i64} {
  func.func @_mlp_kernel(%arg0: i32, %arg1: memref<128x32xf32, #tpu.memory_space<vmem>>, %arg2: memref<32x128xbf16, #tpu.memory_space<vmem>>, %arg3: memref<1x128xf32, #tpu.memory_space<vmem>>, %arg4: memref<128x128xbf16, #tpu.memory_space<vmem>>, %arg5: memref<1x128xf32, #tpu.memory_space<vmem>>, %arg6: memref<1x128xf32, #tpu.memory_space<vmem>>, %arg7: memref<1x1x128xf32, #tpu.memory_space<vmem>>) attributes {dimension_semantics = [#tpu.dimension_semantics<parallel>], iteration_bounds = array<i64: 1>, scalar_prefetch = 0 : i64, scratch_operands = 0 : i64, tpu.core_type = #tpu.core_type<tc>, window_params = [{transform_indices = @transform_0, window_bounds = array<i64: 128, 32>}, {pipeline_mode = #tpu.pipeline_mode<synchronous>, transform_indices = @transform_1, window_bounds = array<i64: 32, 128>}, {pipeline_mode = #tpu.pipeline_mode<synchronous>, transform_indices = @transform_2, window_bounds = array<i64: 1, 128>}, {pipeline_mode = #tpu.pipeline_mode<synchronous>, transform_indices = @transform_3, window_bounds = array<i64: 128, 128>}, {pipeline_mode = #tpu.pipeline_mode<synchronous>, transform_indices = @transform_4, window_bounds = array<i64: 1, 128>}, {pipeline_mode = #tpu.pipeline_mode<synchronous>, transform_indices = @transform_5, window_bounds = array<i64: 1, 128>}, {transform_indices = @transform_6, window_bounds = array<i64: 1, 1, 128>}]} {
    %c0 = arith.constant 0 : index
    %c0_0 = arith.constant 0 : index
    %0 = vector.load %arg1[%c0, %c0_0] : memref<128x32xf32, #tpu.memory_space<vmem>>, vector<128x32xf32>
    %1 = arith.truncf %0 : vector<128x32xf32> to vector<128x32xbf16>
    %c0_1 = arith.constant 0 : index
    %c0_2 = arith.constant 0 : index
    %2 = vector.load %arg2[%c0_1, %c0_2] : memref<32x128xbf16, #tpu.memory_space<vmem>>, vector<32x128xbf16>
    %cst = arith.constant dense<0.000000e+00> : vector<128x128xf32>
    %3 = tpu.matmul %1, %2, %cst {dimension_numbers = #tpu.dot_dimension_numbers<[1], [0], [0], [1], [0, 0, 1, 1], [], []>} : vector<128x32xbf16>, vector<32x128xbf16>, vector<128x128xf32> -> vector<128x128xf32>
    %c0_3 = arith.constant 0 : index
    %c0_4 = arith.constant 0 : index
    %4 = vector.load %arg3[%c0_3, %c0_4] : memref<1x128xf32, #tpu.memory_space<vmem>>, vector<1x128xf32>
    %5 = vector.broadcast %4 : vector<1x128xf32> to vector<128x128xf32>
    %6 = arith.addf %3, %5 : vector<128x128xf32>
    %cst_5 = arith.constant 0.000000e+00 : f32
    %7 = vector.broadcast %cst_5 : f32 to vector<128x128xf32>
    %8 = arith.maximumf %6, %7 : vector<128x128xf32>
    %9 = arith.truncf %8 : vector<128x128xf32> to vector<128x128xbf16>
    %c0_6 = arith.constant 0 : index
    %c0_7 = arith.constant 0 : index
    %10 = vector.load %arg4[%c0_6, %c0_7] : memref<128x128xbf16, #tpu.memory_space<vmem>>, vector<128x128xbf16>
    %cst_8 = arith.constant dense<0.000000e+00> : vector<128x128xf32>
    %11 = tpu.matmul %9, %10, %cst_8 {dimension_numbers = #tpu.dot_dimension_numbers<[1], [0], [0], [1], [0, 0, 1, 1], [], []>} : vector<128x128xbf16>, vector<128x128xbf16>, vector<128x128xf32> -> vector<128x128xf32>
    %c0_9 = arith.constant 0 : index
    %c0_10 = arith.constant 0 : index
    %12 = vector.load %arg5[%c0_9, %c0_10] : memref<1x128xf32, #tpu.memory_space<vmem>>, vector<1x128xf32>
    %13 = vector.broadcast %12 : vector<1x128xf32> to vector<128x128xf32>
    %14 = arith.addf %11, %13 : vector<128x128xf32>
    %cst_11 = arith.constant 0.000000e+00 : f32
    %15 = vector.broadcast %cst_11 : f32 to vector<128x128xf32>
    %16 = arith.maximumf %14, %15 : vector<128x128xf32>
    %c0_12 = arith.constant 0 : index
    %c0_13 = arith.constant 0 : index
    %17 = vector.load %arg6[%c0_12, %c0_13] : memref<1x128xf32, #tpu.memory_space<vmem>>, vector<1x128xf32>
    %18 = vector.broadcast %17 : vector<1x128xf32> to vector<128x128xf32>
    %19 = arith.mulf %16, %18 : vector<128x128xf32>
    %cst_14 = arith.constant dense<0.000000e+00> : vector<128xf32>
    %20 = vector.multi_reduction <add>, %19, %cst_14 [1] : vector<128x128xf32> to vector<128xf32>
    %21 = vector.shape_cast %20 : vector<128xf32> to vector<1x128xf32>
    %22 = vector.shape_cast %21 : vector<1x128xf32> to vector<1x1x128xf32>
    %c0_15 = arith.constant 0 : index
    %c0_16 = arith.constant 0 : index
    %c0_17 = arith.constant 0 : index
    %23 = vector.load %arg7[%c0_15, %c0_16, %c0_17] : memref<1x1x128xf32, #tpu.memory_space<vmem>>, vector<1x1x128xf32>
    tpu.vector_store %arg7[%c0_15, %c0_16, %c0_17], %22 {strides = array<i32>} : memref<1x1x128xf32, #tpu.memory_space<vmem>>, vector<1x1x128xf32>,
    return
  }
  func.func @transform_0(%arg0: i32) -> (i32, i32) {
    %c0_i32 = arith.constant 0 : i32
    %c0_i32_0 = arith.constant 0 : i32
    return %arg0, %c0_i32 : i32, i32
  }
  func.func @transform_1(%arg0: i32) -> (i32, i32) {
    %c0_i32 = arith.constant 0 : i32
    %c0_i32_0 = arith.constant 0 : i32
    %c0_i32_1 = arith.constant 0 : i32
    return %c0_i32, %c0_i32_0 : i32, i32
  }
  func.func @transform_2(%arg0: i32) -> (i32, i32) {
    %c0_i32 = arith.constant 0 : i32
    %c0_i32_0 = arith.constant 0 : i32
    %c0_i32_1 = arith.constant 0 : i32
    return %c0_i32, %c0_i32_0 : i32, i32
  }
  func.func @transform_3(%arg0: i32) -> (i32, i32) {
    %c0_i32 = arith.constant 0 : i32
    %c0_i32_0 = arith.constant 0 : i32
    %c0_i32_1 = arith.constant 0 : i32
    return %c0_i32, %c0_i32_0 : i32, i32
  }
  func.func @transform_4(%arg0: i32) -> (i32, i32) {
    %c0_i32 = arith.constant 0 : i32
    %c0_i32_0 = arith.constant 0 : i32
    %c0_i32_1 = arith.constant 0 : i32
    return %c0_i32, %c0_i32_0 : i32, i32
  }
  func.func @transform_5(%arg0: i32) -> (i32, i32) {
    %c0_i32 = arith.constant 0 : i32
    %c0_i32_0 = arith.constant 0 : i32
    %c0_i32_1 = arith.constant 0 : i32
    return %c0_i32, %c0_i32_0 : i32, i32
  }
  func.func @transform_6(%arg0: i32) -> (i32, i32, i32) {
    %c0_i32 = arith.constant 0 : i32
    %c0_i32_0 = arith.constant 0 : i32
    %c0_i32_1 = arith.constant 0 : i32
    return %arg0, %c0_i32, %c0_i32_0 : i32, i32, i32
  }
}

</mosaic_0001>

<llo_original>
// kernel: discriminator_forward.1
$region0: #{discriminator_forward.1}
  #allocation0 [shape = 'u32[]', space=smem, size = 0x4, offset = 0x4, fixed_abs, tag = 'smem constant byte address 0x4 - core index']
  #allocation1 [shape = 'u32[72,128]{1,0:T(1,128)}', space=vmem, size = 0x9000, scoped, tag = 'internal scratch']
  %s0 = inlined_call_operand.hbm [shape: f32[16,32], index: 0, kind: input, shape index: {}]
  %s1 = inlined_call_operand.hbm [shape: bf16[32,128], index: 1, kind: input, shape index: {}]
  %s2 = inlined_call_operand.vmem [shape: f32[1,128], index: 2, kind: input, shape index: {}]
  %s3 = inlined_call_operand.hbm [shape: bf16[128,128], index: 3, kind: input, shape index: {}]
  %s4 = inlined_call_operand.vmem [shape: f32[1,128], index: 4, kind: input, shape index: {}]
  %s5 = inlined_call_operand.vmem [shape: f32[1,128], index: 5, kind: input, shape index: {}]
  %s6 = inlined_call_operand.vmem [shape: f32[1,1,128], index: 6, kind: output, shape index: {}]
  %s7 = sld [smem:[#allocation0]]
  $region46: #{discriminator_forward.1} parent=0
    _
  %s9 = ssub.s32 1, %s7
  %s10 = scalar_select 0, %s9, %s7
  $region1: #{discriminator_forward.1} parent=0
    #allocation2 [shape = 'u8[65536]{0}', space=vmem, size = 0x10000, scoped, tag = 'input window, operand 0, single buffered']
    #allocation3 [shape = 's32[1]{0}', space=sflag, size = 0x4, scoped, tag = 'scoped memory for discriminator_forward.1']
    #allocation4 [shape = 'u8[8192]{0}', space=vmem, size = 0x2000, scoped, tag = 'input window, operand 1, single buffered']
    #allocation5 [shape = 's32[1]{0}', space=sflag, size = 0x4, scoped, tag = 'scoped memory for discriminator_forward.1']
    #allocation6 [shape = 'u8[32768]{0}', space=vmem, size = 0x8000, scoped, tag = 'input window, operand 3, single buffered']
    %11 = vsyncpa [#allocation3], 0
    %12 = vsyncpa [#allocation5], 0
    // Predicated region
    $region2: #{discriminator_forward.1} parent=1 // pred_check
      _
    $region3: #{discriminator_forward.1} parent=1 // pred_check_branch
      %14 = sbr.rel (0) target = $region5
    $region4: #{discriminator_forward.1} parent=1 // pred_region
      %16 = vsyncadd [#allocation3], 1792
      %s17 = sshll.u32 %s0, 4
      %s18 = int_to_ptr.hbm [resolvable:$true] %s17
      %s19 = sshll.u32 [#allocation2], 4
      %s20 = int_to_ptr.vmem [resolvable:$true] %s19
      %25 = dma.hbm_to_vmem [thread:$0]  %s18, 256, %s20, [#allocation3], 128, 128, 8
    $region5: #{discriminator_forward.1} parent=1 // pred_fallthru
      _
    // Predicated region
    $region6: #{discriminator_forward.1} parent=1 // pred_check
      _
    $region7: #{discriminator_forward.1} parent=1 // pred_check_branch
      %27 = sbr.rel (0) target = $region9
    $region8: #{discriminator_forward.1} parent=1 // pred_region
      %29 = vsyncadd [#allocation5], 0
      %s30 = sshll.u32 %s1, 4
      %s31 = int_to_ptr.hbm [resolvable:$true] %s30
      %s32 = sshll.u32 [#allocation4], 4
      %s33 = int_to_ptr.vmem [resolvable:$true] %s32
      %38 = dma.hbm_to_vmem [thread:$0]  %s31, 256, %s33, [#allocation5], 64, 64, 4
    $region9: #{discriminator_forward.1} parent=1 // pred_fallthru
      _
    // Predicated region
    $region10: #{discriminator_forward.1} parent=1 // pred_check
      _
    $region11: #{discriminator_forward.1} parent=1 // pred_check_branch
      %40 = sbr.rel (0) target = $region13
    $region12: #{discriminator_forward.1} parent=1 // pred_region
      _
    $region13: #{discriminator_forward.1} parent=1 // pred_fallthru
      _
    // Predicated region
    $region14: #{discriminator_forward.1} parent=1 // pred_check
      _
    $region15: #{discriminator_forward.1} parent=1 // pred_check_branch
      %42 = sbr.rel (0) target = $region17
    $region16: #{discriminator_forward.1} parent=1 // pred_region
      %44 = vsyncadd [#allocation5], 0
      %s45 = sshll.u32 %s3, 4
      %s46 = int_to_ptr.hbm [resolvable:$true] %s45
      %s47 = sshll.u32 [#allocation6], 4
      %s48 = int_to_ptr.vmem [resolvable:$true] %s47
      %53 = dma.hbm_to_vmem [thread:$0]  %s46, 1024, %s48, [#allocation5], 64, 64, 4
    $region17: #{discriminator_forward.1} parent=1 // pred_fallthru
      _
    // Predicated region
    $region18: #{discriminator_forward.1} parent=1 // pred_check
      _
    $region19: #{discriminator_forward.1} parent=1 // pred_check_branch
      %55 = sbr.rel (0) target = $region21
    $region20: #{discriminator_forward.1} parent=1 // pred_region
      _
    $region21: #{discriminator_forward.1} parent=1 // pred_fallthru
      _
    // Predicated region
    $region22: #{discriminator_forward.1} parent=1 // pred_check
      _
    $region23: #{discriminator_forward.1} parent=1 // pred_check_branch
      %57 = sbr.rel (0) target = $region25
    $region24: #{discriminator_forward.1} parent=1 // pred_region
      _
    $region25: #{discriminator_forward.1} parent=1 // pred_fallthru
      _
    // Predicated region
    $region26: #{discriminator_forward.1} parent=1 // pred_check
      _
    $region27: #{discriminator_forward.1} parent=1 // pred_check_branch
      %59 = sbr.rel (0) target = $region29
    $region28: #{discriminator_forward.1} parent=1 // pred_region
      %61 = dma.done [#allocation3], 2048
    $region29: #{discriminator_forward.1} parent=1 // pred_fallthru
      _
    // Predicated region
    $region30: #{discriminator_forward.1} parent=1 // pred_check
      _
    $region31: #{discriminator_forward.1} parent=1 // pred_check_branch
      %63 = sbr.rel (0) target = $region33
    $region32: #{discriminator_forward.1} parent=1 // pred_region
      %65 = dma.done [#allocation5], 256
    $region33: #{discriminator_forward.1} parent=1 // pred_fallthru
      _
    // Predicated region
    $region34: #{discriminator_forward.1} parent=1 // pred_check
      _
    $region35: #{discriminator_forward.1} parent=1 // pred_check_branch
      %67 = sbr.rel (0) target = $region37
    $region36: #{discriminator_forward.1} parent=1 // pred_region
      %69 = dma.done [#allocation5], 1024
    $region37: #{discriminator_forward.1} parent=1 // pred_fallthru
      _
    %v71 = vld [vmem:[#allocation2] sm:$0xff]
    %v72 = vld [vmem:[#allocation2 + $0x8] sm:$0xff]
    %v73 = vld [vmem:[#allocation2 + $0x10] sm:$0xff]
    %v74 = vld [vmem:[#allocation2 + $0x18] sm:$0xff]
    %v75 = vld [vmem:[#allocation2 + $0x20] sm:$0xff]
    %v76 = vld [vmem:[#allocation2 + $0x28] sm:$0xff]
    %v77 = vld [vmem:[#allocation2 + $0x30] sm:$0xff]
    %v78 = vld [vmem:[#allocation2 + $0x38] sm:$0xff]
    %v79 = vld [vmem:[#allocation2 + $0x40] sm:$0xff]
    %v80 = vld [vmem:[#allocation2 + $0x48] sm:$0xff]
    %v81 = vld [vmem:[#allocation2 + $0x50] sm:$0xff]
    %v82 = vld [vmem:[#allocation2 + $0x58] sm:$0xff]
    %v83 = vld [vmem:[#allocation2 + $0x60] sm:$0xff]
    %v84 = vld [vmem:[#allocation2 + $0x68] sm:$0xff]
    %v85 = vld [vmem:[#allocation2 + $0x70] sm:$0xff]
    %v86 = vld [vmem:[#allocation2 + $0x78] sm:$0xff]
    %v87 = vpack.c.bf16 %v72, %v71
    %v88 = vpack.c.bf16 %v74, %v73
    %v89 = vpack.c.bf16 %v76, %v75
    %v90 = vpack.c.bf16 %v78, %v77
    %v91 = vpack.c.bf16 %v80, %v79
    %v92 = vpack.c.bf16 %v82, %v81
    %v93 = vpack.c.bf16 %v84, %v83
    %v94 = vpack.c.bf16 %v86, %v85
    %v95 = vld [vmem:[#allocation4] sm:$0xf]
    %v96 = vld [vmem:[#allocation4 + $0x4] sm:$0xf]
    %v97 = vld [vmem:[#allocation4 + $0x8] sm:$0xf]
    %v98 = vld [vmem:[#allocation4 + $0xc] sm:$0xf]
    %v99 = vld [vmem:[%s2] sm:$0x1]
    %v101 = vperm.slane %v99, 0
    %v107 = vunpack.c.l.b16 %v95
    %v108 = vunpack.c.l.b16 %v96
    %v109 = vunpack.c.l.b16 %v97
    %v110 = vunpack.c.l.b16 %v98
    %v111 = vpack.c.b16 %v108, %v107
    %v112 = vpack.c.b16 %v110, %v109
    %vm115 = vcmask 261120
    %v117 = vsel %vm115, %v87, 0
    %v120 = vsel %vm115, %v88, 0
    %v123 = vsel %vm115, %v89, 0
    %v126 = vsel %vm115, %v90, 0
    %v129 = vsel %vm115, %v91, 0
    %v132 = vsel %vm115, %v92, 0
    %v135 = vsel %vm115, %v93, 0
    %v138 = vsel %vm115, %v94, 0
    %140 = vmatpush.bf16.msra.mxu0 0
    %141 = vmatpush.bf16.msra.mxu0 0
    %142 = vmatpush.bf16.msra.mxu0 0
    %143 = vmatpush.bf16.msra.mxu0 0
    %144 = vmatpush.bf16.msra.mxu0 0
    %145 = vmatpush.bf16.msra.mxu0 0
    %146 = vmatpush.bf16.msra.mxu0 %v112
    %147 = vmatpush.bf16.msra.mxu0 %v111
    %148 = vmatmul.bf16.gmra.mxu0 %v117
    %v149 = vpop.f32.mrf.mxu0
    %v150 = vadd.f32 %v101, %v149
    %v151 = vpop.f32.mrf.mxu0
    %v152 = vadd.f32 %v101, %v151
    %153 = vmatmul.bf16.gmra.mxu0 %v120
    %v154 = vpop.f32.mrf.mxu0
    %v155 = vadd.f32 %v101, %v154
    %v156 = vpop.f32.mrf.mxu0
    %v157 = vadd.f32 %v101, %v156
    %158 = vmatmul.bf16.gmra.mxu0 %v123
    %v159 = vpop.f32.mrf.mxu0
    %v160 = vadd.f32 %v101, %v159
    %v161 = vpop.f32.mrf.mxu0
    %v162 = vadd.f32 %v101, %v161
    %163 = vmatmul.bf16.gmra.mxu0 %v126
    %v164 = vpop.f32.mrf.mxu0
    %v165 = vadd.f32 %v101, %v164
    %v166 = vpop.f32.mrf.mxu0
    %v167 = vadd.f32 %v101, %v166
    %168 = vmatmul.bf16.gmra.mxu0 %v129
    %v169 = vpop.f32.mrf.mxu0
    %v170 = vadd.f32 %v101, %v169
    %v171 = vpop.f32.mrf.mxu0
    %v172 = vadd.f32 %v101, %v171
    %173 = vmatmul.bf16.gmra.mxu0 %v132
    %v174 = vpop.f32.mrf.mxu0
    %v175 = vadd.f32 %v101, %v174
    %v176 = vpop.f32.mrf.mxu0
    %v177 = vadd.f32 %v101, %v176
    %178 = vmatmul.bf16.gmra.mxu0 %v135
    %v179 = vpop.f32.mrf.mxu0
    %v180 = vadd.f32 %v101, %v179
    %v181 = vpop.f32.mrf.mxu0
    %v182 = vadd.f32 %v101, %v181
    %183 = vmatmul.bf16.gmra.mxu0 %v138
    %v184 = vpop.f32.mrf.mxu0
    %v185 = vadd.f32 %v101, %v184
    %v186 = vpop.f32.mrf.mxu0
    %v187 = vadd.f32 %v101, %v186
    %188 = vdwg.mxu0
    %v189 = vmax.f32 %v150, 0.0
    %v190 = vmax.f32 %v152, 0.0
    %v191 = vmax.f32 %v155, 0.0
    %v192 = vmax.f32 %v157, 0.0
    %v193 = vmax.f32 %v160, 0.0
    %v194 = vmax.f32 %v162, 0.0
    %v195 = vmax.f32 %v165, 0.0
    %v196 = vmax.f32 %v167, 0.0
    %v197 = vmax.f32 %v170, 0.0
    %v198 = vmax.f32 %v172, 0.0
    %v199 = vmax.f32 %v175, 0.0
    %v200 = vmax.f32 %v177, 0.0
    %v201 = vmax.f32 %v180, 0.0
    %v202 = vmax.f32 %v182, 0.0
    %v203 = vmax.f32 %v185, 0.0
    %v204 = vmax.f32 %v187, 0.0
    %v205 = vpack.c.bf16 %v190, %v189
    %v206 = vpack.c.bf16 %v192, %v191
    %v207 = vpack.c.bf16 %v194, %v193
    %v208 = vpack.c.bf16 %v196, %v195
    %v209 = vpack.c.bf16 %v198, %v197
    %v210 = vpack.c.bf16 %v200, %v199
    %v211 = vpack.c.bf16 %v202, %v201
    %v212 = vpack.c.bf16 %v204, %v203
    %v213 = vld [vmem:[#allocation6] sm:$0xf]
    %v214 = vld [vmem:[#allocation6 + $0x4] sm:$0xf]
    %v215 = vld [vmem:[#allocation6 + $0x8] sm:$0xf]
    %v216 = vld [vmem:[#allocation6 + $0xc] sm:$0xf]
    %v217 = vld [vmem:[#allocation6 + $0x10] sm:$0xf]
    %v218 = vld [vmem:[#allocation6 + $0x14] sm:$0xf]
    %v219 = vld [vmem:[#allocation6 + $0x18] sm:$0xf]
    %v220 = vld [vmem:[#allocation6 + $0x1c] sm:$0xf]
    %v221 = vld [vmem:[#allocation6 + $0x20] sm:$0xf]
    %v222 = vld [vmem:[#allocation6 + $0x24] sm:$0xf]
    %v223 = vld [vmem:[#allocation6 + $0x28] sm:$0xf]
    %v224 = vld [vmem:[#allocation6 + $0x2c] sm:$0xf]
    %v225 = vld [vmem:[#allocation6 + $0x30] sm:$0xf]
    %v226 = vld [vmem:[#allocation6 + $0x34] sm:$0xf]
    %v227 = vld [vmem:[#allocation6 + $0x38] sm:$0xf]
    %v228 = vld [vmem:[#allocation6 + $0x3c] sm:$0xf]
    %v229 = vld [vmem:[%s4] sm:$0x1]
    %v231 = vperm.slane %v229, 0
    %v249 = vunpack.c.l.b16 %v213
    %v250 = vunpack.c.l.b16 %v214
    %v251 = vunpack.c.l.b16 %v215
    %v252 = vunpack.c.l.b16 %v216
    %v253 = vunpack.c.l.b16 %v217
    %v254 = vunpack.c.l.b16 %v218
    %v255 = vunpack.c.l.b16 %v219
    %v256 = vunpack.c.l.b16 %v220
    %v257 = vunpack.c.l.b16 %v221
    %v258 = vunpack.c.l.b16 %v222
    %v259 = vunpack.c.l.b16 %v223
    %v260 = vunpack.c.l.b16 %v224
    %v261 = vunpack.c.l.b16 %v225
    %v262 = vunpack.c.l.b16 %v226
    %v263 = vunpack.c.l.b16 %v227
    %v264 = vunpack.c.l.b16 %v228
    %v265 = vpack.c.b16 %v250, %v249
    %v266 = vpack.c.b16 %v252, %v251
    %v267 = vpack.c.b16 %v254, %v253
    %v268 = vpack.c.b16 %v256, %v255
    %v269 = vpack.c.b16 %v258, %v257
    %v270 = vpack.c.b16 %v260, %v259
    %v271 = vpack.c.b16 %v262, %v261
    %v272 = vpack.c.b16 %v264, %v263
    %281 = vmatpush.bf16.msra.mxu0 %v272
    %282 = vmatpush.bf16.msra.mxu0 %v271
    %283 = vmatpush.bf16.msra.mxu0 %v270
    %284 = vmatpush.bf16.msra.mxu0 %v269
    %285 = vmatpush.bf16.msra.mxu0 %v268
    %286 = vmatpush.bf16.msra.mxu0 %v267
    %287 = vmatpush.bf16.msra.mxu0 %v266
    %288 = vmatpush.bf16.msra.mxu0 %v265
    %289 = vmatmul.bf16.gmra.mxu0 %v205
    %v290 = vpop.f32.mrf.mxu0
    %v291 = vadd.f32 %v231, %v290
    %v292 = vpop.f32.mrf.mxu0
    %v293 = vadd.f32 %v231, %v292
    %294 = vmatmul.bf16.gmra.mxu0 %v206
    %v295 = vpop.f32.mrf.mxu0
    %v296 = vadd.f32 %v231, %v295
    %v297 = vpop.f32.mrf.mxu0
    %v298 = vadd.f32 %v231, %v297
    %299 = vmatmul.bf16.gmra.mxu0 %v207
    %v300 = vpop.f32.mrf.mxu0
    %v301 = vadd.f32 %v231, %v300
    %v302 = vpop.f32.mrf.mxu0
    %v303 = vadd.f32 %v231, %v302
    %304 = vmatmul.bf16.gmra.mxu0 %v208
    %v305 = vpop.f32.mrf.mxu0
    %v306 = vadd.f32 %v231, %v305
    %v307 = vpop.f32.mrf.mxu0
    %v308 = vadd.f32 %v231, %v307
    %309 = vmatmul.bf16.gmra.mxu0 %v209
    %v310 = vpop.f32.mrf.mxu0
    %v311 = vadd.f32 %v231, %v310
    %v312 = vpop.f32.mrf.mxu0
    %v313 = vadd.f32 %v231, %v312
    %314 = vmatmul.bf16.gmra.mxu0 %v210
    %v315 = vpop.f32.mrf.mxu0
    %v316 = vadd.f32 %v231, %v315
    %v317 = vpop.f32.mrf.mxu0
    %v318 = vadd.f32 %v231, %v317
    %319 = vmatmul.bf16.gmra.mxu0 %v211
    %v320 = vpop.f32.mrf.mxu0
    %v321 = vadd.f32 %v231, %v320
    %v322 = vpop.f32.mrf.mxu0
    %v323 = vadd.f32 %v231, %v322
    %324 = vmatmul.bf16.gmra.mxu0 %v212
    %v325 = vpop.f32.mrf.mxu0
    %v326 = vadd.f32 %v231, %v325
    %v327 = vpop.f32.mrf.mxu0
    %v328 = vadd.f32 %v231, %v327
    %329 = vdwg.mxu0
    %v330 = vmax.f32 %v291, 0.0
    %v331 = vmax.f32 %v293, 0.0
    %v332 = vmax.f32 %v296, 0.0
    %v333 = vmax.f32 %v298, 0.0
    %v334 = vmax.f32 %v301, 0.0
    %v335 = vmax.f32 %v303, 0.0
    %v336 = vmax.f32 %v306, 0.0
    %v337 = vmax.f32 %v308, 0.0
    %v338 = vmax.f32 %v311, 0.0
    %v339 = vmax.f32 %v313, 0.0
    %v340 = vmax.f32 %v316, 0.0
    %v341 = vmax.f32 %v318, 0.0
    %v342 = vmax.f32 %v321, 0.0
    %v343 = vmax.f32 %v323, 0.0
    %v344 = vmax.f32 %v326, 0.0
    %v345 = vmax.f32 %v328, 0.0
    %v346 = vld [vmem:[%s5] sm:$0x1]
    %v348 = vperm.slane %v346, 0
    %v350 = vmul.f32 %v330, %v348
    %v351 = vmul.f32 %v331, %v348
    %v352 = vmul.f32 %v332, %v348
    %v353 = vmul.f32 %v333, %v348
    %v354 = vmul.f32 %v334, %v348
    %v355 = vmul.f32 %v335, %v348
    %v356 = vmul.f32 %v336, %v348
    %v357 = vmul.f32 %v337, %v348
    %v358 = vmul.f32 %v338, %v348
    %v359 = vmul.f32 %v339, %v348
    %v360 = vmul.f32 %v340, %v348
    %v361 = vmul.f32 %v341, %v348
    %v362 = vmul.f32 %v342, %v348
    %v363 = vmul.f32 %v343, %v348
    %v364 = vmul.f32 %v344, %v348
    %v365 = vmul.f32 %v345, %v348
    %366 = vadd.xlane.f32.xlu0 %v350
    %v367 = vpop.xlane.xlu0 %366
    %368 = vadd.xlane.f32.xlu0 %v351
    %v369 = vpop.xlane.xlu0 %368
    %370 = vadd.xlane.f32.xlu0 %v352
    %v371 = vpop.xlane.xlu0 %370
    %372 = vadd.xlane.f32.xlu0 %v353
    %v373 = vpop.xlane.xlu0 %372
    %374 = vadd.xlane.f32.xlu0 %v354
    %v375 = vpop.xlane.xlu0 %374
    %376 = vadd.xlane.f32.xlu0 %v355
    %v377 = vpop.xlane.xlu0 %376
    %378 = vadd.xlane.f32.xlu0 %v356
    %v379 = vpop.xlane.xlu0 %378
    %380 = vadd.xlane.f32.xlu0 %v357
    %v381 = vpop.xlane.xlu0 %380
    %382 = vadd.xlane.f32.xlu0 %v358
    %v383 = vpop.xlane.xlu0 %382
    %384 = vadd.xlane.f32.xlu0 %v359
    %v385 = vpop.xlane.xlu0 %384
    %386 = vadd.xlane.f32.xlu0 %v360
    %v387 = vpop.xlane.xlu0 %386
    %388 = vadd.xlane.f32.xlu0 %v361
    %v389 = vpop.xlane.xlu0 %388
    %390 = vadd.xlane.f32.xlu0 %v362
    %v391 = vpop.xlane.xlu0 %390
    %392 = vadd.xlane.f32.xlu0 %v363
    %v393 = vpop.xlane.xlu0 %392
    %394 = vadd.xlane.f32.xlu0 %v364
    %v395 = vpop.xlane.xlu0 %394
    %396 = vadd.xlane.f32.xlu0 %v365
    %v397 = vpop.xlane.xlu0 %396
    %v414 = vlaneseq
    %v415 = vand.u32 %v414, 127
    %v416 = vperm.slane %v367, %v415
    %v417 = vadd.s32 %v415, 4294967288
    %v418 = vperm.slane %v369, %v417
    %vm419 = vcmask 130112
    %v420 = vsel %vm419, %v418, %v416
    %v421 = vadd.s32 %v415, 4294967280
    %v422 = vperm.slane %v371, %v421
    %vm423 = vcmask 195712
    %v424 = vsel %vm423, %v422, %v420
    %v425 = vadd.s32 %v415, 4294967272
    %v426 = vperm.slane %v373, %v425
    %vm427 = vcmask 261312
    %v428 = vsel %vm427, %v426, %v424
    %v429 = vadd.s32 %v415, 4294967264
    %v430 = vperm.slane %v375, %v429
    %vm431 = vcmask 326912
    %v432 = vsel %vm431, %v430, %v428
    %v433 = vadd.s32 %v415, 4294967256
    %v434 = vperm.slane %v377, %v433
    %vm435 = vcmask 392512
    %v436 = vsel %vm435, %v434, %v432
    %v437 = vadd.s32 %v415, 4294967248
    %v438 = vperm.slane %v379, %v437
    %vm439 = vcmask 458112
    %v440 = vsel %vm439, %v438, %v436
    %v441 = vadd.s32 %v415, 4294967240
    %v442 = vperm.slane %v381, %v441
    %vm443 = vcmask 523712
    %v444 = vsel %vm443, %v442, %v440
    %v445 = vadd.s32 %v415, 4294967232
    %v446 = vperm.slane %v383, %v445
    %vm447 = vcmask 589312
    %v448 = vsel %vm447, %v446, %v444
    %v449 = vadd.s32 %v415, 4294967224
    %v450 = vperm.slane %v385, %v449
    %vm451 = vcmask 654912
    %v452 = vsel %vm451, %v450, %v448
    %v453 = vadd.s32 %v415, 4294967216
    %v454 = vperm.slane %v387, %v453
    %vm455 = vcmask 720512
    %v456 = vsel %vm455, %v454, %v452
    %v457 = vadd.s32 %v415, 4294967208
    %v458 = vperm.slane %v389, %v457
    %vm459 = vcmask 786112
    %v460 = vsel %vm459, %v458, %v456
    %v461 = vadd.s32 %v415, 4294967200
    %v462 = vperm.slane %v391, %v461
    %vm463 = vcmask 851712
    %v464 = vsel %vm463, %v462, %v460
    %v465 = vadd.s32 %v415, 4294967192
    %v466 = vperm.slane %v393, %v465
    %vm467 = vcmask 917312
    %v468 = vsel %vm467, %v466, %v464
    %v469 = vadd.s32 %v415, 4294967184
    %v470 = vperm.slane %v395, %v469
    %vm471 = vcmask 982912
    %v472 = vsel %vm471, %v470, %v468
    %v473 = vadd.s32 %v415, 4294967176
    %v474 = vperm.slane %v397, %v473
    %vm475 = vcmask 1048512
    %v476 = vsel %vm475, %v474, %v472
    %478 = vst [vmem:[%s6] sm:$0x1] %v476
    // Predicated region
    $region38: #{discriminator_forward.1} parent=1 // pred_check
      _
    $region39: #{discriminator_forward.1} parent=1 // pred_check_branch
      %480 = sbr.rel (0) target = $region41
    $region40: #{discriminator_forward.1} parent=1 // pred_region
      _
    $region41: #{discriminator_forward.1} parent=1 // pred_fallthru
      _
    // Predicated region
    $region42: #{discriminator_forward.1} parent=1 // pred_check
      _
    $region43: #{discriminator_forward.1} parent=1 // pred_check_branch
      %482 = sbr.rel (0) target = $region45
    $region44: #{discriminator_forward.1} parent=1 // pred_region
      _
    $region45: #{discriminator_forward.1} parent=1 // pred_fallthru
      _
    %483 = vsyncpa [#allocation3], 1
    %484 = vsyncpa [#allocation5], 1

</llo_original>
